<compile_context>
chip_gen: v5e
topology: v5e:2x2
jax: 0.10.0
libtpu: 0.0.40
codegen_flags: <defaults>
</compile_context>

<pallas_src>
import functools

import jax
import jax.numpy as jnp
from jax.experimental import pallas as pl
from jax.experimental.pallas import tpu as pltpu

LANE = 128          # TPU lane width: final-layer weights padded to this width.
_NEG_BIG = -1e30    # pad-lane bias -> exp() underflows to exactly 0 in the softmax.
_MAX_TILE_B = 4096  # step-overhead is already well amortized at this tile size.


def _round_up(x, m):
    return (x + m - 1) // m * m


def _vmem_capacity_bytes():
    try:
        return int(pltpu.get_tpu_info().vmem_capacity_bytes)
    except Exception:
        return 64 << 20   # v7x-safe fallback


_VMEM_CAP = _vmem_capacity_bytes()


def _pick_tile_b(B, F):
    """Batch tile from VMEM budget: double-buffered x/out tiles + lane-padded
    f32 intermediates (h0/h1/logits/exp), using ~1/4 of capacity for headroom
    (weights, compiler scratch)."""
    per_row = 2 * F * 4 + 2 * LANE * 4 + 4 * LANE * 4
    tb = (_VMEM_CAP // 4) // per_row
    tb = min(tb, _MAX_TILE_B)
    tb = min(tb, _round_up(B, 8))          # never larger than the (8-rounded) batch
    return max(8, (tb // 8) * 8)           # f32 sublane multiple


def _mlp_kernel(x_ref, w0_ref, b0_ref, w1_ref, b1_ref, w2_ref, b2_ref, o_ref):
    n_classes = o_ref.shape[-1]

    # ---- dense0 + ReLU (bf16 MXU inputs, f32 accumulation) ----
    x = x_ref[...].astype(jnp.bfloat16)                                   # (TB, F)
    h0 = jnp.dot(x, w0_ref[...], preferred_element_type=jnp.float32)
    h0 = jnp.maximum(h0 + b0_ref[...], 0.0)                               # f32

    # ---- dropout: eval-mode identity ----
    # TODO(synk): training-mode dropout would need pltpu.prng_seed + stateful_bernoulli.

    # ---- dense1 + ReLU ----
    h1 = jnp.dot(h0.astype(jnp.bfloat16), w1_ref[...],
                 preferred_element_type=jnp.float32)
    h1 = jnp.maximum(h1 + b1_ref[...], 0.0)

    # ---- output layer (weights lane-padded to 128; pad lanes carry bias = -1e30) ----
    logits = jnp.dot(h1.astype(jnp.bfloat16), w2_ref[...],
                     preferred_element_type=jnp.float32)
    logits = logits + b2_ref[...]                                         # (TB, 128)

    # ---- numerically-stable softmax; padded lanes contribute exp() == 0 ----
    m = jnp.max(logits, axis=-1, keepdims=True)
    e = jnp.exp(logits - m)
    denom = jnp.sum(e, axis=-1, keepdims=True)
    probs = e * pl.reciprocal(denom, approx=True)                         # EUP slot

    # Store only the valid classes: output array is (B, n_classes), so no
    # wrapper-side slice pass and no (B, 128) f32 output slab in HBM.
    o_ref[...] = probs[:, :n_classes].astype(o_ref.dtype)


def prepare_params(params):
    """One-time weight prep (hoisted out of the per-call path): bf16 weights,
    final layer zero-padded to LANE columns, pad-lane bias set to -1e30.
    Biases stay f32 (bf16 would overflow the -1e30 pad to -inf)."""
    n_classes = params["w2"].shape[1]
    assert n_classes <= LANE, "output head wider than one lane group"
    pad = LANE - n_classes
    return dict(
        w0=params["w0"].astype(jnp.bfloat16),
        b0=params["b0"].astype(jnp.float32),
        w1=params["w1"].astype(jnp.bfloat16),
        b1=params["b1"].astype(jnp.float32),
        w2=jnp.pad(params["w2"], ((0, 0), (0, pad))).astype(jnp.bfloat16),
        b2=jnp.pad(params["b2"], ((0, 0), (0, pad)),
                   constant_values=_NEG_BIG).astype(jnp.float32),
    )


@functools.partial(jax.jit, static_argnames=("n_classes", "tile_b"))
def net_forward(x, prepared, *, n_classes=4, tile_b=None):
    """x: (B, num_features) f32 (bf16 also accepted).  prepared: prepare_params output."""
    B, F = x.shape
    w0, b0 = prepared["w0"], prepared["b0"]
    w1, b1 = prepared["w1"], prepared["b1"]
    w2, b2 = prepared["w2"], prepared["b2"]
    Nn, D = w0.shape[1], w1.shape[1]

    tb = tile_b if tile_b is not None else _pick_tile_b(B, F)
    tb = max(8, (min(tb, _round_up(B, 8)) // 8) * 8)
    n_tiles = pl.cdiv(B, tb)            # ragged last block handled by Pallas (no x pad)

    # Generation-aware VMEM limit: ~80% of capacity (≈51 MiB on v7x), capped at
    # 100 MiB on the 128 MiB parts.
    vmem_limit = int(max(16 << 20, min(0.8 * _VMEM_CAP, 100 << 20)))

    # Weights/biases: full-array blocks, constant index_map -> VMEM-resident
    # across all grid iterations (no re-DMA per batch tile).
    # TODO(synk): for large num_neurons on v7x, add pipeline_mode=pl.Buffered(1)
    # on these resident specs to halve their VMEM footprint.
    resident = lambda a: pl.BlockSpec(a.shape, lambda i: (0,) * a.ndim)

    cost = pl.CostEstimate(
        flops=2 * B * (F * Nn + Nn * D + D * LANE),
        transcendentals=B * LANE,
        bytes_accessed=(x.size * x.dtype.itemsize
                        + sum(a.size * a.dtype.itemsize
                              for a in (w0, b0, w1, b1, w2, b2))
                        + B * n_classes * 4),
    )

    out = pl.pallas_call(
        _mlp_kernel,
        out_shape=jax.ShapeDtypeStruct((B, n_classes), jnp.float32),
        grid_spec=pltpu.PrefetchScalarGridSpec(
            num_scalar_prefetch=0,
            grid=(n_tiles,),
            in_specs=[pl.BlockSpec((tb, F), lambda i: (i, 0)),
                      resident(w0), resident(b0),
                      resident(w1), resident(b1),
                      resident(w2), resident(b2)],
            out_specs=pl.BlockSpec((tb, n_classes), lambda i: (i, 0)),
        ),
        compiler_params=pltpu.CompilerParams(
            # TODO(synk): on v7x, pltpu.CORE_PARALLEL here would shard the batch
            # axis across both TensorCores.
            dimension_semantics=("parallel",),
            vmem_limit_bytes=vmem_limit),
        cost_estimate=cost,
    )(x, w0, b0, w1, b1, w2, b2)

    return out


def init_params(key, num_features, num_neurons, output_dim):
    """Deterministic init mimicking nn.Linear's U(-1/sqrt(fan_in), 1/sqrt(fan_in)).
    Weights stored as (in, out) — transpose of PyTorch layout."""
    ks = jax.random.split(key, 6)

    def lin(kw, kb, fan_in, fan_out):
        bound = 1.0 / jnp.sqrt(jnp.float32(fan_in))
        w = jax.random.uniform(kw, (fan_in, fan_out), jnp.float32, -bound, bound)
        b = jax.random.uniform(kb, (1, fan_out), jnp.float32, -bound, bound)
        return w, b

    w0, b0 = lin(ks[0], ks[1], num_features, num_neurons)
    w1, b1 = lin(ks[2], ks[3], num_neurons, output_dim)
    w2, b2 = lin(ks[4], ks[5], output_dim, 4)
    return dict(w0=w0, b0=b0, w1=w1, b1=b1, w2=w2, b2=b2)


if __name__ == "__main__":
    key = jax.random.PRNGKey(0)
    k_x, k_p = jax.random.split(key)

    B, num_features, num_neurons, output_dim = 8, 32, 64, 16
    x = jax.random.normal(k_x, (B, num_features), jnp.float32)
    params = init_params(k_p, num_features, num_neurons, output_dim)
    prepared = prepare_params(params)     # one-time weight prep, outside the hot path

    out = jax.block_until_ready(net_forward(x, prepared, n_classes=4))

    # Pure-JAX f32 reference (eval-mode dropout == identity).
    h0 = jnp.maximum(x @ params["w0"] + params["b0"], 0.0)
    h1 = jnp.maximum(h0 @ params["w1"] + params["b1"], 0.0)
    ref = jax.nn.softmax(h1 @ params["w2"] + params["b2"], axis=-1)

    assert out.shape == (B, 4)
    # bf16 MXU inputs + approx reciprocal => looser tolerance than pure f32.
    assert jnp.allclose(out, ref, atol=2e-2), float(jnp.max(jnp.abs(out - ref)))
    assert jnp.allclose(jnp.sum(out, axis=-1), 1.0, atol=5e-3)

    print("KERNEL_OK")
</pallas_src>

<mosaic_0001>
module attributes {stable_mosaic.version = 11 : i64} {
  func.func @_mlp_kernel(%arg0: i32, %arg1: memref<8x32xf32, #tpu.memory_space<vmem>>, %arg2: memref<32x64xbf16, #tpu.memory_space<vmem>>, %arg3: memref<1x64xf32, #tpu.memory_space<vmem>>, %arg4: memref<64x16xbf16, #tpu.memory_space<vmem>>, %arg5: memref<1x16xf32, #tpu.memory_space<vmem>>, %arg6: memref<16x128xbf16, #tpu.memory_space<vmem>>, %arg7: memref<1x128xf32, #tpu.memory_space<vmem>>, %arg8: memref<8x4xf32, #tpu.memory_space<vmem>>) attributes {dimension_semantics = [#tpu.dimension_semantics<parallel>], iteration_bounds = array<i64: 1>, scalar_prefetch = 0 : i64, scratch_operands = 0 : i64, tpu.core_type = #tpu.core_type<tc>, window_params = [{transform_indices = @transform_0, window_bounds = array<i64: 8, 32>}, {pipeline_mode = #tpu.pipeline_mode<synchronous>, transform_indices = @transform_1, window_bounds = array<i64: 32, 64>}, {pipeline_mode = #tpu.pipeline_mode<synchronous>, transform_indices = @transform_2, window_bounds = array<i64: 1, 64>}, {pipeline_mode = #tpu.pipeline_mode<synchronous>, transform_indices = @transform_3, window_bounds = array<i64: 64, 16>}, {pipeline_mode = #tpu.pipeline_mode<synchronous>, transform_indices = @transform_4, window_bounds = array<i64: 1, 16>}, {pipeline_mode = #tpu.pipeline_mode<synchronous>, transform_indices = @transform_5, window_bounds = array<i64: 16, 128>}, {pipeline_mode = #tpu.pipeline_mode<synchronous>, transform_indices = @transform_6, window_bounds = array<i64: 1, 128>}, {transform_indices = @transform_7, window_bounds = array<i64: 8, 4>}]} {
    %c0 = arith.constant 0 : index
    %c0_0 = arith.constant 0 : index
    %0 = vector.load %arg1[%c0, %c0_0] : memref<8x32xf32, #tpu.memory_space<vmem>>, vector<8x32xf32>
    %1 = arith.truncf %0 : vector<8x32xf32> to vector<8x32xbf16>
    %c0_1 = arith.constant 0 : index
    %c0_2 = arith.constant 0 : index
    %2 = vector.load %arg2[%c0_1, %c0_2] : memref<32x64xbf16, #tpu.memory_space<vmem>>, vector<32x64xbf16>
    %cst = arith.constant dense<0.000000e+00> : vector<8x64xf32>
    %3 = tpu.matmul %1, %2, %cst {dimension_numbers = #tpu.dot_dimension_numbers<[1], [0], [0], [1], [0, 0, 1, 1], [], []>} : vector<8x32xbf16>, vector<32x64xbf16>, vector<8x64xf32> -> vector<8x64xf32>
    %c0_3 = arith.constant 0 : index
    %c0_4 = arith.constant 0 : index
    %4 = vector.load %arg3[%c0_3, %c0_4] : memref<1x64xf32, #tpu.memory_space<vmem>>, vector<1x64xf32>
    %5 = vector.broadcast %4 : vector<1x64xf32> to vector<8x64xf32>
    %6 = arith.addf %3, %5 : vector<8x64xf32>
    %cst_5 = arith.constant 0.000000e+00 : f32
    %7 = vector.broadcast %cst_5 : f32 to vector<8x64xf32>
    %8 = arith.maximumf %6, %7 : vector<8x64xf32>
    %9 = arith.truncf %8 : vector<8x64xf32> to vector<8x64xbf16>
    %c0_6 = arith.constant 0 : index
    %c0_7 = arith.constant 0 : index
    %10 = vector.load %arg4[%c0_6, %c0_7] : memref<64x16xbf16, #tpu.memory_space<vmem>>, vector<64x16xbf16>
    %cst_8 = arith.constant dense<0.000000e+00> : vector<8x16xf32>
    %11 = tpu.matmul %9, %10, %cst_8 {dimension_numbers = #tpu.dot_dimension_numbers<[1], [0], [0], [1], [0, 0, 1, 1], [], []>} : vector<8x64xbf16>, vector<64x16xbf16>, vector<8x16xf32> -> vector<8x16xf32>
    %c0_9 = arith.constant 0 : index
    %c0_10 = arith.constant 0 : index
    %12 = vector.load %arg5[%c0_9, %c0_10] : memref<1x16xf32, #tpu.memory_space<vmem>>, vector<1x16xf32>
    %13 = vector.broadcast %12 : vector<1x16xf32> to vector<8x16xf32>
    %14 = arith.addf %11, %13 : vector<8x16xf32>
    %cst_11 = arith.constant 0.000000e+00 : f32
    %15 = vector.broadcast %cst_11 : f32 to vector<8x16xf32>
    %16 = arith.maximumf %14, %15 : vector<8x16xf32>
    %17 = arith.truncf %16 : vector<8x16xf32> to vector<8x16xbf16>
    %c0_12 = arith.constant 0 : index
    %c0_13 = arith.constant 0 : index
    %18 = vector.load %arg6[%c0_12, %c0_13] : memref<16x128xbf16, #tpu.memory_space<vmem>>, vector<16x128xbf16>
    %cst_14 = arith.constant dense<0.000000e+00> : vector<8x128xf32>
    %19 = tpu.matmul %17, %18, %cst_14 {dimension_numbers = #tpu.dot_dimension_numbers<[1], [0], [0], [1], [0, 0, 1, 1], [], []>} : vector<8x16xbf16>, vector<16x128xbf16>, vector<8x128xf32> -> vector<8x128xf32>
    %c0_15 = arith.constant 0 : index
    %c0_16 = arith.constant 0 : index
    %20 = vector.load %arg7[%c0_15, %c0_16] : memref<1x128xf32, #tpu.memory_space<vmem>>, vector<1x128xf32>
    %21 = vector.broadcast %20 : vector<1x128xf32> to vector<8x128xf32>
    %22 = arith.addf %19, %21 : vector<8x128xf32>
    %cst_17 = arith.constant dense<0xFF800000> : vector<8xf32>
    %23 = vector.multi_reduction <maximumf>, %22, %cst_17 [1] : vector<8x128xf32> to vector<8xf32>
    %24 = vector.shape_cast %23 : vector<8xf32> to vector<8x1xf32>
    %25 = vector.broadcast %24 : vector<8x1xf32> to vector<8x128xf32>
    %26 = arith.subf %22, %25 : vector<8x128xf32>
    %27 = math.exp %26 : vector<8x128xf32>
    %cst_18 = arith.constant dense<0.000000e+00> : vector<8xf32>
    %28 = vector.multi_reduction <add>, %27, %cst_18 [1] : vector<8x128xf32> to vector<8xf32>
    %29 = vector.shape_cast %28 : vector<8xf32> to vector<8x1xf32>
    %30 = tpu.reciprocal %29 {approx = true} : vector<8x1xf32> -> vector<8x1xf32>
    %31 = vector.broadcast %30 : vector<8x1xf32> to vector<8x128xf32>
    %32 = arith.mulf %27, %31 : vector<8x128xf32>
    %33 = vector.extract_strided_slice %32 {offsets = [0, 0], sizes = [8, 4], strides = [1, 1]} : vector<8x128xf32> to vector<8x4xf32>
    %c0_19 = arith.constant 0 : index
    %c0_20 = arith.constant 0 : index
    %34 = vector.load %arg8[%c0_19, %c0_20] : memref<8x4xf32, #tpu.memory_space<vmem>>, vector<8x4xf32>
    tpu.vector_store %arg8[%c0_19, %c0_20], %33 {strides = array<i32>} : memref<8x4xf32, #tpu.memory_space<vmem>>, vector<8x4xf32>,
    return
  }
  func.func @transform_0(%arg0: i32) -> (i32, i32) {
    %c0_i32 = arith.constant 0 : i32
    %c0_i32_0 = arith.constant 0 : i32
    return %arg0, %c0_i32 : i32, i32
  }
  func.func @transform_1(%arg0: i32) -> (i32, i32) {
    %c0_i32 = arith.constant 0 : i32
    %c0_i32_0 = arith.constant 0 : i32
    %c0_i32_1 = arith.constant 0 : i32
    return %c0_i32, %c0_i32_0 : i32, i32
  }
  func.func @transform_2(%arg0: i32) -> (i32, i32) {
    %c0_i32 = arith.constant 0 : i32
    %c0_i32_0 = arith.constant 0 : i32
    %c0_i32_1 = arith.constant 0 : i32
    return %c0_i32, %c0_i32_0 : i32, i32
  }
  func.func @transform_3(%arg0: i32) -> (i32, i32) {
    %c0_i32 = arith.constant 0 : i32
    %c0_i32_0 = arith.constant 0 : i32
    %c0_i32_1 = arith.constant 0 : i32
    return %c0_i32, %c0_i32_0 : i32, i32
  }
  func.func @transform_4(%arg0: i32) -> (i32, i32) {
    %c0_i32 = arith.constant 0 : i32
    %c0_i32_0 = arith.constant 0 : i32
    %c0_i32_1 = arith.constant 0 : i32
    return %c0_i32, %c0_i32_0 : i32, i32
  }
  func.func @transform_5(%arg0: i32) -> (i32, i32) {
    %c0_i32 = arith.constant 0 : i32
    %c0_i32_0 = arith.constant 0 : i32
    %c0_i32_1 = arith.constant 0 : i32
    return %c0_i32, %c0_i32_0 : i32, i32
  }
  func.func @transform_6(%arg0: i32) -> (i32, i32) {
    %c0_i32 = arith.constant 0 : i32
    %c0_i32_0 = arith.constant 0 : i32
    %c0_i32_1 = arith.constant 0 : i32
    return %c0_i32, %c0_i32_0 : i32, i32
  }
  func.func @transform_7(%arg0: i32) -> (i32, i32) {
    %c0_i32 = arith.constant 0 : i32
    %c0_i32_0 = arith.constant 0 : i32
    return %arg0, %c0_i32 : i32, i32
  }
}

</mosaic_0001>

<llo_original>
// kernel: net_forward.1
$region0: #{net_forward.1}
  #allocation0 [shape = 'u32[]', space=smem, size = 0x4, offset = 0x4, fixed_abs, tag = 'smem constant byte address 0x4 - core index']
  #allocation1 [shape = 'u32[72,128]{1,0:T(1,128)}', space=vmem, size = 0x9000, scoped, tag = 'internal scratch']
  %s0 = inlined_call_operand.vmem [shape: f32[8,32], index: 0, kind: input, shape index: {}]
  %s1 = inlined_call_operand.vmem [shape: bf16[32,64], index: 1, kind: input, shape index: {}]
  %s2 = inlined_call_operand.vmem [shape: f32[1,64], index: 2, kind: input, shape index: {}]
  %s3 = inlined_call_operand.vmem [shape: bf16[64,16], index: 3, kind: input, shape index: {}]
  %s4 = inlined_call_operand.vmem [shape: f32[1,16], index: 4, kind: input, shape index: {}]
  %s5 = inlined_call_operand.vmem [shape: bf16[16,128], index: 5, kind: input, shape index: {}]
  %s6 = inlined_call_operand.vmem [shape: f32[1,128], index: 6, kind: input, shape index: {}]
  %s7 = inlined_call_operand.vmem [shape: f32[8,4], index: 7, kind: output, shape index: {}]
  %s8 = sld [smem:[#allocation0]]
  $region38: #{net_forward.1} parent=0
    _
  %s10 = ssub.s32 1, %s8
  %s11 = scalar_select 0, %s10, %s8
  // Predicated region
  $region2: #{net_forward.1} parent=0 // pred_check
    _
  $region3: #{net_forward.1} parent=0 // pred_check_branch
    %13 = sbr.rel (0) target = $region5
  $region4: #{net_forward.1} parent=0 // pred_region
    _
  $region5: #{net_forward.1} parent=0 // pred_fallthru
    _
  // Predicated region
  $region6: #{net_forward.1} parent=0 // pred_check
    _
  $region7: #{net_forward.1} parent=0 // pred_check_branch
    %15 = sbr.rel (0) target = $region9
  $region8: #{net_forward.1} parent=0 // pred_region
    _
  $region9: #{net_forward.1} parent=0 // pred_fallthru
    _
  // Predicated region
  $region10: #{net_forward.1} parent=0 // pred_check
    _
  $region11: #{net_forward.1} parent=0 // pred_check_branch
    %17 = sbr.rel (0) target = $region13
  $region12: #{net_forward.1} parent=0 // pred_region
    _
  $region13: #{net_forward.1} parent=0 // pred_fallthru
    _
  // Predicated region
  $region14: #{net_forward.1} parent=0 // pred_check
    _
  $region15: #{net_forward.1} parent=0 // pred_check_branch
    %19 = sbr.rel (0) target = $region17
  $region16: #{net_forward.1} parent=0 // pred_region
    _
  $region17: #{net_forward.1} parent=0 // pred_fallthru
    _
  // Predicated region
  $region18: #{net_forward.1} parent=0 // pred_check
    _
  $region19: #{net_forward.1} parent=0 // pred_check_branch
    %21 = sbr.rel (0) target = $region21
  $region20: #{net_forward.1} parent=0 // pred_region
    _
  $region21: #{net_forward.1} parent=0 // pred_fallthru
    _
  // Predicated region
  $region22: #{net_forward.1} parent=0 // pred_check
    _
  $region23: #{net_forward.1} parent=0 // pred_check_branch
    %23 = sbr.rel (0) target = $region25
  $region24: #{net_forward.1} parent=0 // pred_region
    _
  $region25: #{net_forward.1} parent=0 // pred_fallthru
    _
  // Predicated region
  $region26: #{net_forward.1} parent=0 // pred_check
    _
  $region27: #{net_forward.1} parent=0 // pred_check_branch
    %25 = sbr.rel (0) target = $region29
  $region28: #{net_forward.1} parent=0 // pred_region
    _
  $region29: #{net_forward.1} parent=0 // pred_fallthru
    _
  %v27 = vld [vmem:[%s0] sm:$0xff]
  %v28 = vpack.c.bf16 %v27, %v27
  %v29 = vld [vmem:[%s1] sm:$0xf]
  %v30 = vld [vmem:[%s1 + $0x4] sm:$0xf]
  %v31 = vld [vmem:[%s1 + $0x8] sm:$0xf]
  %v32 = vld [vmem:[%s1 + $0xc] sm:$0xf]
  %v33 = vld [vmem:[%s2] sm:$0x1]
  %v35 = vperm.slane %v33, 0
  %v41 = vunpack.c.l.b16 %v29
  %v42 = vunpack.c.l.b16 %v30
  %v43 = vunpack.c.l.b16 %v31
  %v44 = vunpack.c.l.b16 %v32
  %v45 = vpack.c.b16 %v42, %v41
  %v46 = vpack.c.b16 %v44, %v43
  %vm49 = vcmask 261120
  %v51 = vsel %vm49, %v28, 0
  %53 = vmatpush.bf16.msra.mxu0 0
  %54 = vmatpush.bf16.msra.mxu0 0
  %55 = vmatpush.bf16.msra.mxu0 0
  %56 = vmatpush.bf16.msra.mxu0 0
  %57 = vmatpush.bf16.msra.mxu0 0
  %58 = vmatpush.bf16.msra.mxu0 0
  %59 = vmatpush.bf16.msra.mxu0 %v46
  %60 = vmatpush.bf16.msra.mxu0 %v45
  %61 = vmatmul.bf16.gmra.mxu0 %v51
  %v62 = vpop.f32.mrf.mxu0
  %v63 = vadd.f32 %v35, %v62
  %v64 = vpop.f32.mrf.mxu0
  %65 = vdwg.mxu0
  %v66 = vmax.f32 %v63, 0.0
  %v67 = vpack.c.bf16 %v66, %v66
  %v68 = vld [vmem:[%s3] sm:$0xf]
  %v69 = vld [vmem:[%s3 + $0x4] sm:$0xf]
  %v70 = vld [vmem:[%s3 + $0x8] sm:$0xf]
  %v71 = vld [vmem:[%s3 + $0xc] sm:$0xf]
  %v72 = vld [vmem:[%s3 + $0x10] sm:$0xf]
  %v73 = vld [vmem:[%s3 + $0x14] sm:$0xf]
  %v74 = vld [vmem:[%s3 + $0x18] sm:$0xf]
  %v75 = vld [vmem:[%s3 + $0x1c] sm:$0xf]
  %v76 = vld [vmem:[%s4] sm:$0x1]
  %v78 = vperm.slane %v76, 0
  %v88 = vunpack.c.l.b16 %v68
  %v89 = vunpack.c.l.b16 %v69
  %v90 = vunpack.c.l.b16 %v70
  %v91 = vunpack.c.l.b16 %v71
  %v92 = vunpack.c.l.b16 %v72
  %v93 = vunpack.c.l.b16 %v73
  %v94 = vunpack.c.l.b16 %v74
  %v95 = vunpack.c.l.b16 %v75
  %v96 = vpack.c.b16 %v89, %v88
  %v97 = vpack.c.b16 %v91, %v90
  %v98 = vpack.c.b16 %v93, %v92
  %v99 = vpack.c.b16 %v95, %v94
  %vm104 = vcmask 523264
  %v106 = vsel %vm104, %v67, 0
  %108 = vmatpush.bf16.msra.mxu0 0
  %109 = vmatpush.bf16.msra.mxu0 0
  %110 = vmatpush.bf16.msra.mxu0 0
  %111 = vmatpush.bf16.msra.mxu0 0
  %112 = vmatpush.bf16.msra.mxu0 %v99
  %113 = vmatpush.bf16.msra.mxu0 %v98
  %114 = vmatpush.bf16.msra.mxu0 %v97
  %115 = vmatpush.bf16.msra.mxu0 %v96
  %116 = vmatmul.bf16.gmra.mxu0 %v106
  %v117 = vpop.f32.mrf.mxu0
  %v118 = vadd.f32 %v78, %v117
  %v119 = vpop.f32.mrf.mxu0
  %120 = vdwg.mxu0
  %v121 = vmax.f32 %v118, 0.0
  %v122 = vpack.c.bf16 %v121, %v121
  %v123 = vld [vmem:[%s5] sm:$0xf]
  %v124 = vld [vmem:[%s5 + $0x4] sm:$0xf]
  %v125 = vld [vmem:[%s6] sm:$0x1]
  %v127 = vperm.slane %v125, 0
  %v131 = vunpack.c.l.b16 %v123
  %v132 = vunpack.c.l.b16 %v124
  %v133 = vpack.c.b16 %v132, %v131
  %vm135 = vcmask 130048
  %v137 = vsel %vm135, %v122, 0
  %139 = vmatpush.bf16.msra.mxu0 0
  %140 = vmatpush.bf16.msra.mxu0 0
  %141 = vmatpush.bf16.msra.mxu0 0
  %142 = vmatpush.bf16.msra.mxu0 0
  %143 = vmatpush.bf16.msra.mxu0 0
  %144 = vmatpush.bf16.msra.mxu0 0
  %145 = vmatpush.bf16.msra.mxu0 0
  %146 = vmatpush.bf16.msra.mxu0 %v133
  %147 = vmatmul.bf16.gmra.mxu0 %v137
  %v148 = vpop.f32.mrf.mxu0
  %v149 = vadd.f32 %v127, %v148
  %v150 = vpop.f32.mrf.mxu0
  %151 = vdwg.mxu0
  %152 = vmax.xlane.f32.xlu0 %v149
  %v153 = vpop.xlane.xlu0 %152
  %v154 = vsub.f32 %v149, %v153
  %v155 = vmul.f32 %v154, 1.442695
  %v156 = vpow.pop %v155
  %157 = vadd.xlane.f32.xlu0 %v156
  %v158 = vpop.xlane.xlu0 %157
  %v159 = vrcp.pop %v158
  %v160 = vmul.f32 %v156, %v159
  %vm161 = vcmask 31744
  %162 = vst.msk [vmem:[%s7] sm:$0xff] %vm161, %v160
  // Predicated region
  $region30: #{net_forward.1} parent=0 // pred_check
    _
  $region31: #{net_forward.1} parent=0 // pred_check_branch
    %164 = sbr.rel (0) target = $region33
  $region32: #{net_forward.1} parent=0 // pred_region
    _
  $region33: #{net_forward.1} parent=0 // pred_fallthru
    _
  // Predicated region
  $region34: #{net_forward.1} parent=0 // pred_check
    _
  $region35: #{net_forward.1} parent=0 // pred_check_branch
    %166 = sbr.rel (0) target = $region37
  $region36: #{net_forward.1} parent=0 // pred_region
    _
  $region37: #{net_forward.1} parent=0 // pred_fallthru
    _

</llo_original>
